<compile_context>
chip_gen: v7x
topology: tpu7x:2x2x1
jax: 0.10.0
libtpu: 0.0.40
codegen_flags: <defaults>
</compile_context>

<pallas_src>
import math
import numpy as np

import jax
import jax.numpy as jnp
from jax import lax
from jax.experimental import pallas as pl
from jax.experimental.pallas import tpu as pltpu

_SQRT1_2 = 0.7071067811865476


def _round_up(x, m):
    return ((x + m - 1) // m) * m


# ---------------------------------------------------------------------------
# in-kernel helpers (f32 epilogue math)
# ---------------------------------------------------------------------------
def _erf_poly(x):
    # Abramowitz & Stegun 7.1.26 polynomial, |err| < 1.5e-7 at f32 resolution.
    # TODO(synk): lax.erf has no guaranteed Mosaic lowering; polynomial matches
    # torch.erf to float32 precision.
    p = 0.3275911
    a1, a2, a3, a4, a5 = 0.254829592, -0.284496736, 1.421413741, -1.453152027, 1.061405429
    ax = jnp.abs(x)
    t = pl.reciprocal(1.0 + p * ax, approx=True)   # EUP slot, frees the VALU
    poly = ((((a5 * t + a4) * t + a3) * t + a2) * t + a1) * t
    y = 1.0 - poly * jnp.exp(-ax * ax)             # exp also on the EUP
    return jnp.where(x < 0.0, -y, y)


def _gelu_exact(x):
    return x * 0.5 * (1.0 + _erf_poly(x * _SQRT1_2))


# ---------------------------------------------------------------------------
# kernels
# ---------------------------------------------------------------------------
def _dense_gelu_kernel_1k(x_ref, w_ref, b_ref, o_ref):
    # whole K in one tile: single fused matmul + bias + GELU, no revisits
    y = jnp.dot(x_ref[...], w_ref[...], preferred_element_type=jnp.float32)
    o_ref[...] = _gelu_exact(y + b_ref[...])


def _dense_gelu_kernel_mk(x_ref, w_ref, b_ref, o_ref):
    # K-tiled: accumulate in the resident f32 output tile (no VMEM scratch)
    k = pl.program_id(2)

    @pl.when(k == 0)
    def _():
        o_ref[...] = jnp.zeros_like(o_ref)

    o_ref[...] += jnp.dot(x_ref[...], w_ref[...],
                          preferred_element_type=jnp.float32)

    @pl.when(k == pl.num_programs(2) - 1)
    def _():
        o_ref[...] = _gelu_exact(o_ref[...] + b_ref[...])


# ---------------------------------------------------------------------------
# wrapper: tiling, padding, one-time weight transpose + bf16 cast
# ---------------------------------------------------------------------------
def bert_intermediate(x, w, b, *, tm=256, tn=512, tk=2048):
    """x: (..., D) f32, w: (Di, D) torch nn.Linear layout, b: (Di,). Returns (..., Di) f32."""
    orig_shape = x.shape
    D = orig_shape[-1]
    Di, D_w = w.shape
    assert D_w == D, "weight in_features must match hidden dim"
    R = int(np.prod(orig_shape[:-1]))

    # adapt tile sizes to the problem while keeping (8, 128) alignment
    tm = max(8, min(tm, _round_up(R, 8)))
    tn = max(128, min(tn, _round_up(Di, 128)))
    tk = max(128, min(tk, _round_up(D, 128)))

    Dp128 = _round_up(D, 128)
    single_k = Dp128 <= tk                 # K fits in one tile -> no reduction axis

    Dp = Dp128 if single_k else _round_up(D, tk)
    Rp = _round_up(R, tm)
    Dip = _round_up(Di, tn)

    # bf16 matmul operands (half the HBM traffic, native MXU dtype)
    x2 = x.reshape(R, D).astype(jnp.bfloat16)
    wt = w.T.astype(jnp.bfloat16)          # one-time (D, Di) transpose in HBM
    if (Rp, Dp) != (R, D):
        x2 = jnp.pad(x2, ((0, Rp - R), (0, Dp - D)))
    if (Dp, Dip) != (D, Di):
        wt = jnp.pad(wt, ((0, Dp - D), (0, Dip - Di)))
    b2 = jnp.pad(b.astype(jnp.float32), (0, Dip - Di)).reshape(1, Dip)

    if single_k:
        out = pl.pallas_call(
            _dense_gelu_kernel_1k,
            out_shape=jax.ShapeDtypeStruct((Rp, Dip), jnp.float32),
            grid_spec=pltpu.PrefetchScalarGridSpec(
                num_scalar_prefetch=0,
                grid=(Rp // tm, Dip // tn),
                in_specs=[
                    pl.BlockSpec((tm, Dp), lambda i, j: (i, 0)),   # activation row-strip
                    pl.BlockSpec((Dp, tn), lambda i, j: (0, j)),   # weight column-strip
                    pl.BlockSpec((1, tn), lambda i, j: (0, j)),    # bias (replicated over i)
                ],
                out_specs=pl.BlockSpec((tm, tn), lambda i, j: (i, j)),
            ),
            compiler_params=pltpu.CompilerParams(
                dimension_semantics=("parallel", "parallel"),
                vmem_limit_bytes=32 * 1024 * 1024,   # safe on v5e/v6e/v7x with these tiles
            ),
        )(x2, wt, b2)
    else:
        out = pl.pallas_call(
            _dense_gelu_kernel_mk,
            out_shape=jax.ShapeDtypeStruct((Rp, Dip), jnp.float32),
            grid_spec=pltpu.PrefetchScalarGridSpec(
                num_scalar_prefetch=0,
                grid=(Rp // tm, Dip // tn, Dp // tk),
                in_specs=[
                    pl.BlockSpec((tm, tk), lambda i, j, k: (i, k)),   # activation tile
                    pl.BlockSpec((tk, tn), lambda i, j, k: (k, j)),   # weight tile
                    pl.BlockSpec((1, tn), lambda i, j, k: (0, j)),    # bias (replicated over i, k)
                ],
                out_specs=pl.BlockSpec((tm, tn), lambda i, j, k: (i, j)),  # resident over K
            ),
            compiler_params=pltpu.CompilerParams(
                dimension_semantics=("parallel", "parallel", "arbitrary"),
                vmem_limit_bytes=32 * 1024 * 1024,
            ),
        )(x2, wt, b2)

    return out[:R, :Di].reshape(*orig_shape[:-1], Di)


# ---------------------------------------------------------------------------
# pure-JAX reference (mirrors the PyTorch module)
# ---------------------------------------------------------------------------
def ref_bert_intermediate(x, w, b):
    y = jnp.einsum("...i,oi->...o", x, w, precision=lax.Precision.HIGHEST) + b
    return y * 0.5 * (1.0 + jax.scipy.special.erf(y / math.sqrt(2.0)))


# ---------------------------------------------------------------------------
if __name__ == "__main__":
    key = jax.random.PRNGKey(0)
    k1, k2, k3, k4, k5, k6 = jax.random.split(key, 6)

    # case 1: small shape implied by the module (batch=2, seq=8, hidden=32,
    # intermediate=128) -> exercises the single-pass fused kernel
    N, L, D, Di = 2, 8, 32, 128
    x = jax.random.normal(k1, (N, L, D), jnp.float32)
    w = 0.05 * jax.random.normal(k2, (Di, D), jnp.float32)
    b = 0.05 * jax.random.normal(k3, (Di,), jnp.float32)
    out = bert_intermediate(x, w, b)
    jax.block_until_ready(out)
    ref = ref_bert_intermediate(x, w, b)
    np.testing.assert_allclose(np.asarray(out), np.asarray(ref), rtol=2e-2, atol=2e-2)

    # case 2: forces the multi-tile grid and the K-reduction (output-resident
    # accumulator) path via a small tk
    N2, L2, D2, Di2 = 2, 64, 256, 1024
    x2 = jax.random.normal(k4, (N2, L2, D2), jnp.float32)
    w2 = 0.03 * jax.random.normal(k5, (Di2, D2), jnp.float32)
    b2 = 0.03 * jax.random.normal(k6, (Di2,), jnp.float32)
    out2 = bert_intermediate(x2, w2, b2, tm=64, tn=256, tk=128)
    jax.block_until_ready(out2)
    ref2 = ref_bert_intermediate(x2, w2, b2)
    np.testing.assert_allclose(np.asarray(out2), np.asarray(ref2), rtol=2e-2, atol=2e-2)

    print("KERNEL_OK")
</pallas_src>

<mosaic_0001>
module attributes {stable_mosaic.version = 11 : i64} {
  func.func @_dense_gelu_kernel_1k(%arg0: i32, %arg1: i32, %arg2: memref<16x128xbf16, #tpu.memory_space<vmem>>, %arg3: memref<128x128xbf16, #tpu.memory_space<vmem>>, %arg4: memref<1x128xf32, #tpu.memory_space<vmem>>, %arg5: memref<16x128xf32, #tpu.memory_space<vmem>>) attributes {dimension_semantics = [#tpu.dimension_semantics<parallel>, #tpu.dimension_semantics<parallel>], iteration_bounds = array<i64: 1, 1>, scalar_prefetch = 0 : i64, scratch_operands = 0 : i64, tpu.core_type = #tpu.core_type<tc>, window_params = [{transform_indices = @transform_0, window_bounds = array<i64: 16, 128>}, {transform_indices = @transform_1, window_bounds = array<i64: 128, 128>}, {transform_indices = @transform_2, window_bounds = array<i64: 1, 128>}, {transform_indices = @transform_3, window_bounds = array<i64: 16, 128>}]} {
    %c0 = arith.constant 0 : index
    %c0_0 = arith.constant 0 : index
    %0 = vector.load %arg2[%c0, %c0_0] : memref<16x128xbf16, #tpu.memory_space<vmem>>, vector<16x128xbf16>
    %c0_1 = arith.constant 0 : index
    %c0_2 = arith.constant 0 : index
    %1 = vector.load %arg3[%c0_1, %c0_2] : memref<128x128xbf16, #tpu.memory_space<vmem>>, vector<128x128xbf16>
    %cst = arith.constant dense<0.000000e+00> : vector<16x128xf32>
    %2 = tpu.matmul %0, %1, %cst {dimension_numbers = #tpu.dot_dimension_numbers<[1], [0], [0], [1], [0, 0, 1, 1], [], []>} : vector<16x128xbf16>, vector<128x128xbf16>, vector<16x128xf32> -> vector<16x128xf32>
    %c0_3 = arith.constant 0 : index
    %c0_4 = arith.constant 0 : index
    %3 = vector.load %arg4[%c0_3, %c0_4] : memref<1x128xf32, #tpu.memory_space<vmem>>, vector<1x128xf32>
    %4 = vector.broadcast %3 : vector<1x128xf32> to vector<16x128xf32>
    %5 = arith.addf %2, %4 : vector<16x128xf32>
    %cst_5 = arith.constant 5.000000e-01 : f32
    %6 = vector.broadcast %cst_5 : f32 to vector<16x128xf32>
    %7 = arith.mulf %5, %6 : vector<16x128xf32>
    %cst_6 = arith.constant 0.707106769 : f32
    %8 = vector.broadcast %cst_6 : f32 to vector<16x128xf32>
    %9 = arith.mulf %5, %8 : vector<16x128xf32>
    %10 = math.absf %9 : vector<16x128xf32>
    %cst_7 = arith.constant 0.327591091 : f32
    %11 = vector.broadcast %cst_7 : f32 to vector<16x128xf32>
    %12 = arith.mulf %11, %10 : vector<16x128xf32>
    %cst_8 = arith.constant 1.000000e+00 : f32
    %13 = vector.broadcast %cst_8 : f32 to vector<16x128xf32>
    %14 = arith.addf %13, %12 : vector<16x128xf32>
    %15 = tpu.reciprocal %14 {approx = true} : vector<16x128xf32> -> vector<16x128xf32>
    %cst_9 = arith.constant 1.06140542 : f32
    %16 = vector.broadcast %cst_9 : f32 to vector<16x128xf32>
    %17 = arith.mulf %16, %15 : vector<16x128xf32>
    %cst_10 = arith.constant -1.45315206 : f32
    %18 = vector.broadcast %cst_10 : f32 to vector<16x128xf32>
    %19 = arith.addf %17, %18 : vector<16x128xf32>
    %20 = arith.mulf %19, %15 : vector<16x128xf32>
    %cst_11 = arith.constant 1.42141378 : f32
    %21 = vector.broadcast %cst_11 : f32 to vector<16x128xf32>
    %22 = arith.addf %20, %21 : vector<16x128xf32>
    %23 = arith.mulf %22, %15 : vector<16x128xf32>
    %cst_12 = arith.constant -0.284496725 : f32
    %24 = vector.broadcast %cst_12 : f32 to vector<16x128xf32>
    %25 = arith.addf %23, %24 : vector<16x128xf32>
    %26 = arith.mulf %25, %15 : vector<16x128xf32>
    %cst_13 = arith.constant 0.254829586 : f32
    %27 = vector.broadcast %cst_13 : f32 to vector<16x128xf32>
    %28 = arith.addf %26, %27 : vector<16x128xf32>
    %29 = arith.mulf %28, %15 : vector<16x128xf32>
    %cst_14 = arith.constant 0.000000e+00 : f32
    %30 = vector.broadcast %cst_14 : f32 to vector<16x128xf32>
    %31 = arith.subf %30, %10 : vector<16x128xf32>
    %32 = arith.mulf %31, %10 : vector<16x128xf32>
    %33 = math.exp %32 : vector<16x128xf32>
    %34 = arith.mulf %29, %33 : vector<16x128xf32>
    %cst_15 = arith.constant 1.000000e+00 : f32
    %35 = vector.broadcast %cst_15 : f32 to vector<16x128xf32>
    %36 = arith.subf %35, %34 : vector<16x128xf32>
    %cst_16 = arith.constant 0.000000e+00 : f32
    %37 = vector.broadcast %cst_16 : f32 to vector<16x128xf32>
    %38 = arith.cmpf olt, %9, %37 : vector<16x128xf32>
    %cst_17 = arith.constant 0.000000e+00 : f32
    %39 = vector.broadcast %cst_17 : f32 to vector<16x128xf32>
    %40 = arith.subf %39, %36 : vector<16x128xf32>
    %41 = arith.select %38, %40, %36 : vector<16x128xi1>, vector<16x128xf32>
    %cst_18 = arith.constant 1.000000e+00 : f32
    %42 = vector.broadcast %cst_18 : f32 to vector<16x128xf32>
    %43 = arith.addf %42, %41 : vector<16x128xf32>
    %44 = arith.mulf %7, %43 : vector<16x128xf32>
    %c0_19 = arith.constant 0 : index
    %c0_20 = arith.constant 0 : index
    %45 = vector.load %arg5[%c0_19, %c0_20] : memref<16x128xf32, #tpu.memory_space<vmem>>, vector<16x128xf32>
    tpu.vector_store %arg5[%c0_19, %c0_20], %44 {strides = array<i32>} : memref<16x128xf32, #tpu.memory_space<vmem>>, vector<16x128xf32>,
    return
  }
  func.func @transform_0(%arg0: i32, %arg1: i32) -> (i32, i32) {
    %c0_i32 = arith.constant 0 : i32
    %c0_i32_0 = arith.constant 0 : i32
    return %arg0, %c0_i32 : i32, i32
  }
  func.func @transform_1(%arg0: i32, %arg1: i32) -> (i32, i32) {
    %c0_i32 = arith.constant 0 : i32
    %c0_i32_0 = arith.constant 0 : i32
    return %c0_i32, %arg1 : i32, i32
  }
  func.func @transform_2(%arg0: i32, %arg1: i32) -> (i32, i32) {
    %c0_i32 = arith.constant 0 : i32
    %c0_i32_0 = arith.constant 0 : i32
    return %c0_i32, %arg1 : i32, i32
  }
  func.func @transform_3(%arg0: i32, %arg1: i32) -> (i32, i32) {
    %c0_i32 = arith.constant 0 : i32
    return %arg0, %arg1 : i32, i32
  }
}

</mosaic_0001>

<llo_original>
// kernel: tpu_custom_call.1
$region0: #{tpu_custom_call.1}
  #allocation0 [shape = 'u32[]', space=smem, size = 0x4, offset = 0x4, fixed_abs, tag = 'smem constant byte address 0x4 - core index']
  #allocation1 [shape = 'u32[144,128]{1,0:T(1,128)}', space=vmem, size = 0x12000, scoped, tag = 'internal scratch']
  %s0 = inlined_call_operand.hbm [shape: bf16[16,128], index: 0, kind: input, shape index: {}]
  %s1 = inlined_call_operand.hbm [shape: bf16[128,128], index: 1, kind: input, shape index: {}]
  %s2 = inlined_call_operand.vmem [shape: f32[1,128], index: 2, kind: input, shape index: {}]
  %s3 = inlined_call_operand.hbm [shape: f32[16,128], index: 3, kind: output, shape index: {}]
  %s4 = sld [smem:[#allocation0]]
  $region30: #{tpu_custom_call.1} parent=0
    _
  %s6 = ssub.s32 1, %s4
  %s7 = scalar_select 0, %s6, %s4
  $region1: #{tpu_custom_call.1} parent=0
    #allocation2 [shape = 'u8[4096]{0}', space=vmem, size = 0x1000, scoped, tag = 'input window, operand 0, single buffered']
    #allocation3 [shape = 's32[1]{0}', space=sflag, size = 0x4, scoped, tag = 'scoped memory for tpu_custom_call.1']
    #allocation4 [shape = 's32[1]{0}', space=sflag, size = 0x4, scoped, tag = 'scoped memory for tpu_custom_call.1']
    #allocation5 [shape = 'u8[32768]{0}', space=vmem, size = 0x8000, scoped, tag = 'input window, operand 1, single buffered']
    #allocation6 [shape = 's32[1]{0}', space=sflag, size = 0x4, scoped, tag = 'scoped memory for tpu_custom_call.1']
    #allocation7 [shape = 'u8[8192]{0}', space=vmem, size = 0x2000, scoped, tag = 'output window, operand 0, single buffered']
    %8 = vsyncpa [#allocation3], 0
    %9 = vsyncpa [#allocation6], 0
    %10 = vsyncpa [#allocation4], 0
    // Predicated region
    $region2: #{tpu_custom_call.1} parent=1 // pred_check
      _
    $region3: #{tpu_custom_call.1} parent=1 // pred_check_branch
      %12 = sbr.rel (0) target = $region5
    $region4: #{tpu_custom_call.1} parent=1 // pred_region
      %s14 = ssub.s32 128, 128
      %15 = vsyncadd [#allocation3], %s14
      %s16 = sshll.u32 [#allocation2], 4
      %s17 = int_to_ptr.vmem [resolvable:$true] %s16
      %22 = dma.hbm_to_vmem [thread:$0]  %s0, 128, %s17, [#allocation3], 64, 64, 4
    $region5: #{tpu_custom_call.1} parent=1 // pred_fallthru
      _
    // Predicated region
    $region6: #{tpu_custom_call.1} parent=1 // pred_check
      _
    $region7: #{tpu_custom_call.1} parent=1 // pred_check_branch
      %24 = sbr.rel (0) target = $region9
    $region8: #{tpu_custom_call.1} parent=1 // pred_region
      %s26 = ssub.s32 1024, 1024
      %27 = vsyncadd [#allocation6], %s26
      %s28 = sshll.u32 [#allocation5], 4
      %s29 = int_to_ptr.vmem [resolvable:$true] %s28
      %34 = dma.hbm_to_vmem [thread:$0]  %s1, 1024, %s29, [#allocation6], 64, 64, 4
    $region9: #{tpu_custom_call.1} parent=1 // pred_fallthru
      _
    // Predicated region
    $region10: #{tpu_custom_call.1} parent=1 // pred_check
      _
    $region11: #{tpu_custom_call.1} parent=1 // pred_check_branch
      %36 = sbr.rel (0) target = $region13
    $region12: #{tpu_custom_call.1} parent=1 // pred_region
      _
    $region13: #{tpu_custom_call.1} parent=1 // pred_fallthru
      _
    // Predicated region
    $region14: #{tpu_custom_call.1} parent=1 // pred_check
      _
    $region15: #{tpu_custom_call.1} parent=1 // pred_check_branch
      %38 = sbr.rel (0) target = $region17
    $region16: #{tpu_custom_call.1} parent=1 // pred_region
      %39 = dma.done [#allocation3], 128
    $region17: #{tpu_custom_call.1} parent=1 // pred_fallthru
      _
    // Predicated region
    $region18: #{tpu_custom_call.1} parent=1 // pred_check
      _
    $region19: #{tpu_custom_call.1} parent=1 // pred_check_branch
      %41 = sbr.rel (0) target = $region21
    $region20: #{tpu_custom_call.1} parent=1 // pred_region
      %42 = dma.done [#allocation6], 1024
    $region21: #{tpu_custom_call.1} parent=1 // pred_fallthru
      _
    %v44 = vld [vmem:[#allocation2] sm:$0xf]
    %v45 = vld [vmem:[#allocation2 + $0x4] sm:$0xf]
    %v46 = vld [vmem:[#allocation5] sm:$0xf]
    %v47 = vld [vmem:[#allocation5 + $0x4] sm:$0xf]
    %v48 = vld [vmem:[#allocation5 + $0x8] sm:$0xf]
    %v49 = vld [vmem:[#allocation5 + $0xc] sm:$0xf]
    %v50 = vld [vmem:[#allocation5 + $0x10] sm:$0xf]
    %v51 = vld [vmem:[#allocation5 + $0x14] sm:$0xf]
    %v52 = vld [vmem:[#allocation5 + $0x18] sm:$0xf]
    %v53 = vld [vmem:[#allocation5 + $0x1c] sm:$0xf]
    %v54 = vld [vmem:[#allocation5 + $0x20] sm:$0xf]
    %v55 = vld [vmem:[#allocation5 + $0x24] sm:$0xf]
    %v56 = vld [vmem:[#allocation5 + $0x28] sm:$0xf]
    %v57 = vld [vmem:[#allocation5 + $0x2c] sm:$0xf]
    %v58 = vld [vmem:[#allocation5 + $0x30] sm:$0xf]
    %v59 = vld [vmem:[#allocation5 + $0x34] sm:$0xf]
    %v60 = vld [vmem:[#allocation5 + $0x38] sm:$0xf]
    %v61 = vld [vmem:[#allocation5 + $0x3c] sm:$0xf]
    %v62 = vld [vmem:[%s2] sm:$0x1]
    %v64 = vlaneseq
    %v65 = vshrl.u32 %v64, 7
    %v66 = vsub.s32 0, %v65
    %v67 = vrot.slane %v62, %v66
    %v71 = vunpack.c.l.b16 %v44
    %v72 = vunpack.c.l.b16 %v45
    %v73 = vpack.c.b16 %v72, %v71
    %v91 = vunpack.c.l.b16 %v46
    %v92 = vunpack.c.l.b16 %v47
    %v93 = vunpack.c.l.b16 %v48
    %v94 = vunpack.c.l.b16 %v49
    %v95 = vunpack.c.l.b16 %v50
    %v96 = vunpack.c.l.b16 %v51
    %v97 = vunpack.c.l.b16 %v52
    %v98 = vunpack.c.l.b16 %v53
    %v99 = vunpack.c.l.b16 %v54
    %v100 = vunpack.c.l.b16 %v55
    %v101 = vunpack.c.l.b16 %v56
    %v102 = vunpack.c.l.b16 %v57
    %v103 = vunpack.c.l.b16 %v58
    %v104 = vunpack.c.l.b16 %v59
    %v105 = vunpack.c.l.b16 %v60
    %v106 = vunpack.c.l.b16 %v61
    %v107 = vpack.c.b16 %v92, %v91
    %v108 = vpack.c.b16 %v94, %v93
    %v109 = vpack.c.b16 %v96, %v95
    %v110 = vpack.c.b16 %v98, %v97
    %v111 = vpack.c.b16 %v100, %v99
    %v112 = vpack.c.b16 %v102, %v101
    %v113 = vpack.c.b16 %v104, %v103
    %v114 = vpack.c.b16 %v106, %v105
    %123 = vmatprep.subr.bf16.mxu0 0
    %124 = vmatpush1.bf16.msra.mxu0 %v107
    %125 = vmatprep.subr.bf16.mxu0 0
    %126 = vmatpush1.bf16.msra.mxu0 %v108
    %127 = vmatprep.subr.bf16.mxu0 0
    %128 = vmatpush1.bf16.msra.mxu0 %v109
    %129 = vmatprep.subr.bf16.mxu0 0
    %130 = vmatpush1.bf16.msra.mxu0 %v110
    %131 = vmatprep.subr.bf16.mxu0 0
    %132 = vmatpush1.bf16.msra.mxu0 %v111
    %133 = vmatprep.subr.bf16.mxu0 0
    %134 = vmatpush1.bf16.msra.mxu0 %v112
    %135 = vmatprep.subr.bf16.mxu0 0
    %136 = vmatpush1.bf16.msra.mxu0 %v113
    %137 = vmatprep.subr.bf16.mxu0 0
    %138 = vmatpush1.bf16.msra.mxu0 %v114
    %139 = vmatprep.subr.bf16.mxu0 0
    %140 = vmatpush1.bf16.msra.mxu0 0
    %141 = vmatprep.subr.bf16.mxu0 0
    %142 = vmatpush1.bf16.msra.mxu0 0
    %143 = vmatprep.subr.bf16.mxu0 0
    %144 = vmatpush1.bf16.msra.mxu0 0
    %145 = vmatprep.subr.bf16.mxu0 0
    %146 = vmatpush1.bf16.msra.mxu0 0
    %147 = vmatprep.subr.bf16.mxu0 0
    %148 = vmatpush1.bf16.msra.mxu0 0
    %149 = vmatprep.subr.bf16.mxu0 0
    %150 = vmatpush1.bf16.msra.mxu0 0
    %151 = vmatprep.subr.bf16.mxu0 0
    %152 = vmatpush1.bf16.msra.mxu0 0
    %153 = vmatprep.subr.bf16.mxu0 0
    %154 = vmatpush1.bf16.msra.mxu0 0
    %155 = vmatprep.mubr.bf16.mxu0 0
    %156 = vmatmul.mubr.bf16.gmra.mrb[0].mxu0 %v73
    %v157 = vpop.f32.mrb[0].mxu0
    %v158 = vadd.f32 %v67, %v157
    %v159 = vpop.f32.mrb[0].mxu0
    %v160 = vpop.f32.mrb[0].mxu0
    %v161 = vadd.f32 %v67, %v160
    %v162 = vpop.f32.mrb[0].mxu0
    %163 = vdwg.mxu0
    %v164 = vmul.f32 %v158, 0.5
    %v165 = vmul.f32 %v161, 0.5
    %v166 = vmul.f32 %v158, 0.70710677
    %v167 = vmul.f32 %v161, 0.70710677
    %v168 = vand.u32 2147483647, %v166
    %v169 = vand.u32 2147483647, %v167
    %v170 = vmul.f32 %v168, 0.3275911
    %v171 = vmul.f32 %v169, 0.3275911
    %v172 = vadd.f32 %v170, 1.0
    %v173 = vadd.f32 %v171, 1.0
    %v174 = vrcp.pop %v172
    %v175 = vrcp.pop %v173
    %v176 = vmul.f32 %v174, 1.0614054
    %v177 = vmul.f32 %v175, 1.0614054
    %v178 = vadd.f32 %v176, -1.4531521
    %v179 = vadd.f32 %v177, -1.4531521
    %v180 = vmul.f32 %v178, %v174
    %v181 = vmul.f32 %v179, %v175
    %v182 = vadd.f32 %v180, 1.4214138
    %v183 = vadd.f32 %v181, 1.4214138
    %v184 = vmul.f32 %v182, %v174
    %v185 = vmul.f32 %v183, %v175
    %v186 = vadd.f32 %v184, -0.28449672
    %v187 = vadd.f32 %v185, -0.28449672
    %v188 = vmul.f32 %v186, %v174
    %v189 = vmul.f32 %v187, %v175
    %v190 = vadd.f32 %v188, 0.2548296
    %v191 = vadd.f32 %v189, 0.2548296
    %v192 = vmul.f32 %v190, %v174
    %v193 = vmul.f32 %v191, %v175
    %v194 = vsub.f32 0.0, %v168
    %v195 = vsub.f32 0.0, %v169
    %v196 = vmul.f32 %v194, %v168
    %v197 = vmul.f32 %v195, %v169
    %v198 = vmul.f32 %v196, 1.442695
    %v199 = vpow.pop %v198
    %v200 = vmul.f32 %v197, 1.442695
    %v201 = vpow.pop %v200
    %v202 = vmul.f32 %v192, %v199
    %v203 = vmul.f32 %v193, %v201
    %v204 = vsub.f32 1.0, %v202
    %v205 = vsub.f32 1.0, %v203
    %vm206 = vcmp.lt.f32.partialorder %v166, 0.0
    %vm207 = vcmp.lt.f32.partialorder %v167, 0.0
    %v208 = vsub.f32 0.0, %v204
    %v209 = vsub.f32 0.0, %v205
    %v210 = vsel %vm206, %v208, %v204
    %v211 = vsel %vm207, %v209, %v205
    %v212 = vadd.f32 %v210, 1.0
    %v213 = vadd.f32 %v211, 1.0
    %v214 = vmul.f32 %v164, %v212
    %v215 = vmul.f32 %v165, %v213
    %216 = vst [vmem:[#allocation7] sm:$0xff] %v214
    %217 = vst [vmem:[#allocation7 + $0x8] sm:$0xff] %v215
    // Predicated region
    $region22: #{tpu_custom_call.1} parent=1 // pred_check
      _
    $region23: #{tpu_custom_call.1} parent=1 // pred_check_branch
      %219 = sbr.rel (0) target = $region25
    $region24: #{tpu_custom_call.1} parent=1 // pred_region
      %s221 = ssub.s32 256, 256
      %222 = vsyncadd [#allocation4], %s221
      %s223 = sshll.u32 [#allocation7], 4
      %s224 = int_to_ptr.vmem [resolvable:$true] %s223
      %229 = dma.vmem_to_hbm [thread:$0]  %s224, 256, %s3, [#allocation4], 128, 128, 8
    $region25: #{tpu_custom_call.1} parent=1 // pred_fallthru
      _
    // Predicated region
    $region26: #{tpu_custom_call.1} parent=1 // pred_check
      _
    $region27: #{tpu_custom_call.1} parent=1 // pred_check_branch
      %231 = sbr.rel (0) target = $region29
    $region28: #{tpu_custom_call.1} parent=1 // pred_region
      %232 = dma.done [#allocation4], 256
    $region29: #{tpu_custom_call.1} parent=1 // pred_fallthru
      _
    %233 = vsyncpa [#allocation3], 1
    %234 = vsyncpa [#allocation6], 1
    %235 = vsyncpa [#allocation4], 1

</llo_original>
